<compile_context>
chip_gen: v7x
topology: tpu7x:2x2x1
jax: 0.10.0
libtpu: 0.0.40
codegen_flags: <defaults>
</compile_context>

<pallas_src>
import functools

import jax
import jax.numpy as jnp
from jax.experimental import pallas as pl
from jax.experimental.pallas import tpu as pltpu

HIDDEN = 256


def _critic_kernel(x_ref, w1_ref, b1_ref, w2_ref, b2_ref, w3_ref, b3_ref, o_ref,
                   *, compute_dtype):
    """Fused 3-layer MLP on one batch tile, computed transposed (batch on lanes).

    x_ref  : (D, tb)   compute_dtype  activations (batch in lanes)
    w*_ref : PyTorch (out, in) layout, compute_dtype, VMEM-resident
    b1/b2  : (H, 1)    f32            per-feature column, broadcasts over lanes
    b3_ref : (1,)      f32            scalar in SMEM
    o_ref  : (1, tb)   f32            lane-dense value row
    """
    # Layers 1+2: MXU matmuls with f32 accumulation; bias/ReLU on the VPU in f32.
    h1 = jnp.dot(w1_ref[...], x_ref[...], preferred_element_type=jnp.float32)
    h1 = jnp.maximum(h1 + b1_ref[...], 0.0)                        # (H, tb) f32
    h2 = jnp.dot(w2_ref[...], h1.astype(compute_dtype),
                 preferred_element_type=jnp.float32)
    h2 = jnp.maximum(h2 + b2_ref[...], 0.0)                        # (H, tb) f32
    # Layer 3 is a 1-row GEMV: with W3 stored lane-dense as (1, H), the result
    # is already the (1, tb) lane-dense output row -- no transpose, no masked
    # store, no padded (256, 1) weight tile.
    v = jnp.dot(w3_ref[...], h2.astype(compute_dtype),
                preferred_element_type=jnp.float32) + b3_ref[0]    # (1, tb) f32
    o_ref[...] = v.astype(o_ref.dtype)


def _pick_batch_tile(B):
    # Small batches: one tile (block == full array dims, always a legal block).
    if B <= 1024:
        return B
    # Large batches: largest tile in {2048,...,128} that divides B and leaves at
    # least 2 grid steps (so the "parallel" axis can shard across v7x's two
    # TensorCores and the auto-pipeline overlaps DMA with compute).
    for tb in (2048, 1024, 512, 256, 128):
        if B % tb == 0 and B // tb >= 2:
            return tb
    # Awkward batch size: pad up to a multiple of 1024 in the wrapper.
    return 1024


def critic_forward(state, params, *, batch_tile=None, compute_dtype=jnp.float32):
    """state: (B, D) float32. Returns (B, 1) float32 value estimates.

    params are in PyTorch nn.Linear layout:
      w1 (256, D), b1 (256,), w2 (256, 256), b2 (256,), w3 (1, 256), b3 (1,)
    """
    w1, b1, w2, b2, w3, b3 = params
    B, D = state.shape
    cd = jnp.dtype(compute_dtype)

    tb = _pick_batch_tile(B) if batch_tile is None else batch_tile
    if batch_tile is not None and tb < B:
        # Keep user-supplied tiles legal: the lane (batch) block dim must be a
        # multiple of 128 or cover the whole (padded) batch.
        assert tb % 128 == 0, "explicit batch_tile must be a multiple of 128"
    n_tiles = -(-B // tb)
    Bp = n_tiles * tb

    # Batch on lanes: transpose once in the wrapper -> lane-dense input DMA.
    x_t = state.T.astype(cd)                        # (D, B)
    if Bp != B:
        x_t = jnp.pad(x_t, ((0, 0), (0, Bp - B)))   # pad batch to a tile multiple

    w1c, w2c, w3c = (w.astype(cd) for w in (w1, w2, w3))
    b1c = b1.reshape(HIDDEN, 1).astype(jnp.float32)
    b2c = b2.reshape(HIDDEN, 1).astype(jnp.float32)
    b3c = b3.reshape(1).astype(jnp.float32)

    out = pl.pallas_call(
        functools.partial(_critic_kernel, compute_dtype=cd),
        out_shape=jax.ShapeDtypeStruct((1, Bp), jnp.float32),
        grid_spec=pltpu.PrefetchScalarGridSpec(
            num_scalar_prefetch=0,
            grid=(n_tiles,),
            in_specs=[
                # batch tile of x^T: lane-dense, one streaming DMA per step
                pl.BlockSpec((D, tb), lambda i: (0, i)),
                # weights / biases: constant block index -> copied once, resident
                pl.BlockSpec((HIDDEN, D), lambda i: (0, 0)),
                pl.BlockSpec((HIDDEN, 1), lambda i: (0, 0)),
                pl.BlockSpec((HIDDEN, HIDDEN), lambda i: (0, 0)),
                pl.BlockSpec((HIDDEN, 1), lambda i: (0, 0)),
                pl.BlockSpec((1, HIDDEN), lambda i: (0, 0)),
                # scalar output bias lives in SMEM
                pl.BlockSpec(memory_space=pltpu.MemorySpace.SMEM),
            ],
            out_specs=pl.BlockSpec((1, tb), lambda i: (0, i)),
        ),
        compiler_params=pltpu.CompilerParams(
            # megacore-shard the batch grid (2 TCs on v7x)
            dimension_semantics=("parallel",),
            # Explicit, auditable VMEM budget: resident weights (~264 KiB) +
            # double-buffered x/out tiles + (H, tb) f32 intermediates stay far
            # below 32 MiB, which is <= default/physical on v5e, v6e and v7x.
            vmem_limit_bytes=32 * 1024 * 1024,
        ),
    )(x_t, w1c, b1c, w2c, b2c, w3c, b3c)

    return out[0, :B].reshape(B, 1)


def init_params(key, input_dims):
    """PyTorch nn.Linear-layout params, uniform +-1/sqrt(fan_in) init."""
    (d,) = input_dims
    k1, k2, k3, k4, k5, k6 = jax.random.split(key, 6)

    def unif(k, shape, fan_in):
        bound = 1.0 / jnp.sqrt(jnp.float32(fan_in))
        return jax.random.uniform(k, shape, jnp.float32, -bound, bound)

    w1 = unif(k1, (HIDDEN, d), d)            # (out, in), like torch
    b1 = unif(k2, (HIDDEN,), d)
    w2 = unif(k3, (HIDDEN, HIDDEN), HIDDEN)
    b2 = unif(k4, (HIDDEN,), HIDDEN)
    w3 = unif(k5, (1, HIDDEN), HIDDEN)
    b3 = unif(k6, (1,), HIDDEN)
    return (w1, b1, w2, b2, w3, b3)


def _reference(state, params):
    w1, b1, w2, b2, w3, b3 = params
    h1 = jnp.maximum(state @ w1.T + b1, 0.0)
    h2 = jnp.maximum(h1 @ w2.T + b2, 0.0)
    return h2 @ w3.T + b3


if __name__ == "__main__":
    key = jax.random.PRNGKey(0)
    k_params, k_state = jax.random.split(key)

    input_dims = (8,)                 # CriticNetwork(input_dims=(8,), ...)
    params = init_params(k_params, input_dims)

    def run_case(batch, compute_dtype, tol):
        k = jax.random.fold_in(k_state, batch)
        state = jax.random.normal(k, (batch, input_dims[0]), jnp.float32)
        out = jax.block_until_ready(
            critic_forward(state, params, compute_dtype=compute_dtype))
        ref = _reference(state, params)
        assert out.shape == (batch, 1), out.shape
        err = jnp.max(jnp.abs(out - ref))
        assert jnp.allclose(out, ref, atol=tol, rtol=tol), (
            f"mismatch: B={batch} dtype={compute_dtype} max|err|={err}")

    run_case(8,    jnp.float32, 1e-3)     # small single-tile case
    run_case(2048, jnp.float32, 1e-3)     # multi-tile pipelined / megacore grid
    run_case(1500, jnp.float32, 1e-3)     # ragged batch -> padded to tile multiple
    run_case(2048, jnp.bfloat16, 8e-2)    # bf16 MXU inputs, f32 accumulation

    print("KERNEL_OK")
</pallas_src>

<mosaic_0001>
module attributes {stable_mosaic.version = 11 : i64} {
  func.func @_critic_kernel(%arg0: i32, %arg1: memref<8x8xf32, #tpu.memory_space<vmem>>, %arg2: memref<256x8xf32, #tpu.memory_space<vmem>>, %arg3: memref<256x1xf32, #tpu.memory_space<vmem>>, %arg4: memref<256x256xf32, #tpu.memory_space<vmem>>, %arg5: memref<256x1xf32, #tpu.memory_space<vmem>>, %arg6: memref<1x256xf32, #tpu.memory_space<vmem>>, %arg7: memref<1xf32, #tpu.memory_space<smem>>, %arg8: memref<1x8xf32, #tpu.memory_space<vmem>>) attributes {dimension_semantics = [#tpu.dimension_semantics<parallel>], iteration_bounds = array<i64: 1>, scalar_prefetch = 0 : i64, scratch_operands = 0 : i64, tpu.core_type = #tpu.core_type<tc>, window_params = [{transform_indices = @transform_0, window_bounds = array<i64: 8, 8>}, {pipeline_mode = #tpu.pipeline_mode<synchronous>, transform_indices = @transform_1, window_bounds = array<i64: 256, 8>}, {pipeline_mode = #tpu.pipeline_mode<synchronous>, transform_indices = @transform_2, window_bounds = array<i64: 256, 1>}, {pipeline_mode = #tpu.pipeline_mode<synchronous>, transform_indices = @transform_3, window_bounds = array<i64: 256, 256>}, {pipeline_mode = #tpu.pipeline_mode<synchronous>, transform_indices = @transform_4, window_bounds = array<i64: 256, 1>}, {pipeline_mode = #tpu.pipeline_mode<synchronous>, transform_indices = @transform_5, window_bounds = array<i64: 1, 256>}, {transform_indices = @transform_6, window_bounds = array<i64: 1>}, {transform_indices = @transform_7, window_bounds = array<i64: 1, 8>}]} {
    %c0 = arith.constant 0 : index
    %c0_0 = arith.constant 0 : index
    %0 = vector.load %arg2[%c0, %c0_0] : memref<256x8xf32, #tpu.memory_space<vmem>>, vector<256x8xf32>
    %c0_1 = arith.constant 0 : index
    %c0_2 = arith.constant 0 : index
    %1 = vector.load %arg1[%c0_1, %c0_2] : memref<8x8xf32, #tpu.memory_space<vmem>>, vector<8x8xf32>
    %cst = arith.constant dense<0.000000e+00> : vector<256x8xf32>
    %2 = tpu.matmul %0, %1, %cst {dimension_numbers = #tpu.dot_dimension_numbers<[1], [0], [0], [1], [0, 0, 1, 1], [], []>} : vector<256x8xf32>, vector<8x8xf32>, vector<256x8xf32> -> vector<256x8xf32>
    %c0_3 = arith.constant 0 : index
    %c0_4 = arith.constant 0 : index
    %3 = vector.load %arg3[%c0_3, %c0_4] : memref<256x1xf32, #tpu.memory_space<vmem>>, vector<256x1xf32>
    %4 = vector.broadcast %3 : vector<256x1xf32> to vector<256x8xf32>
    %5 = arith.addf %2, %4 : vector<256x8xf32>
    %cst_5 = arith.constant 0.000000e+00 : f32
    %6 = vector.broadcast %cst_5 : f32 to vector<256x8xf32>
    %7 = arith.maximumf %5, %6 : vector<256x8xf32>
    %c0_6 = arith.constant 0 : index
    %c0_7 = arith.constant 0 : index
    %8 = vector.load %arg4[%c0_6, %c0_7] : memref<256x256xf32, #tpu.memory_space<vmem>>, vector<256x256xf32>
    %cst_8 = arith.constant dense<0.000000e+00> : vector<256x8xf32>
    %9 = tpu.matmul %8, %7, %cst_8 {dimension_numbers = #tpu.dot_dimension_numbers<[1], [0], [0], [1], [0, 0, 1, 1], [], []>} : vector<256x256xf32>, vector<256x8xf32>, vector<256x8xf32> -> vector<256x8xf32>
    %c0_9 = arith.constant 0 : index
    %c0_10 = arith.constant 0 : index
    %10 = vector.load %arg5[%c0_9, %c0_10] : memref<256x1xf32, #tpu.memory_space<vmem>>, vector<256x1xf32>
    %11 = vector.broadcast %10 : vector<256x1xf32> to vector<256x8xf32>
    %12 = arith.addf %9, %11 : vector<256x8xf32>
    %cst_11 = arith.constant 0.000000e+00 : f32
    %13 = vector.broadcast %cst_11 : f32 to vector<256x8xf32>
    %14 = arith.maximumf %12, %13 : vector<256x8xf32>
    %c0_12 = arith.constant 0 : index
    %c0_13 = arith.constant 0 : index
    %15 = vector.load %arg6[%c0_12, %c0_13] : memref<1x256xf32, #tpu.memory_space<vmem>>, vector<1x256xf32>
    %cst_14 = arith.constant dense<0.000000e+00> : vector<1x8xf32>
    %16 = tpu.matmul %15, %14, %cst_14 {dimension_numbers = #tpu.dot_dimension_numbers<[1], [0], [0], [1], [0, 0, 1, 1], [], []>} : vector<1x256xf32>, vector<256x8xf32>, vector<1x8xf32> -> vector<1x8xf32>
    %c0_15 = arith.constant 0 : index
    %17 = memref.load %arg7[%c0_15] : memref<1xf32, #tpu.memory_space<smem>>
    %18 = vector.broadcast %17 : f32 to vector<1x8xf32>
    %19 = arith.addf %16, %18 : vector<1x8xf32>
    %c0_16 = arith.constant 0 : index
    %c0_17 = arith.constant 0 : index
    %20 = vector.load %arg8[%c0_16, %c0_17] : memref<1x8xf32, #tpu.memory_space<vmem>>, vector<1x8xf32>
    tpu.vector_store %arg8[%c0_16, %c0_17], %19 {strides = array<i32>} : memref<1x8xf32, #tpu.memory_space<vmem>>, vector<1x8xf32>,
    return
  }
  func.func @transform_0(%arg0: i32) -> (i32, i32) {
    %c0_i32 = arith.constant 0 : i32
    %c0_i32_0 = arith.constant 0 : i32
    return %c0_i32, %arg0 : i32, i32
  }
  func.func @transform_1(%arg0: i32) -> (i32, i32) {
    %c0_i32 = arith.constant 0 : i32
    %c0_i32_0 = arith.constant 0 : i32
    %c0_i32_1 = arith.constant 0 : i32
    return %c0_i32, %c0_i32_0 : i32, i32
  }
  func.func @transform_2(%arg0: i32) -> (i32, i32) {
    %c0_i32 = arith.constant 0 : i32
    %c0_i32_0 = arith.constant 0 : i32
    %c0_i32_1 = arith.constant 0 : i32
    return %c0_i32, %c0_i32_0 : i32, i32
  }
  func.func @transform_3(%arg0: i32) -> (i32, i32) {
    %c0_i32 = arith.constant 0 : i32
    %c0_i32_0 = arith.constant 0 : i32
    %c0_i32_1 = arith.constant 0 : i32
    return %c0_i32, %c0_i32_0 : i32, i32
  }
  func.func @transform_4(%arg0: i32) -> (i32, i32) {
    %c0_i32 = arith.constant 0 : i32
    %c0_i32_0 = arith.constant 0 : i32
    %c0_i32_1 = arith.constant 0 : i32
    return %c0_i32, %c0_i32_0 : i32, i32
  }
  func.func @transform_5(%arg0: i32) -> (i32, i32) {
    %c0_i32 = arith.constant 0 : i32
    %c0_i32_0 = arith.constant 0 : i32
    %c0_i32_1 = arith.constant 0 : i32
    return %c0_i32, %c0_i32_0 : i32, i32
  }
  func.func @transform_6(%arg0: i32) -> i32 {
    %c0_i32 = arith.constant 0 : i32
    %c0_i32_0 = arith.constant 0 : i32
    return %c0_i32 : i32
  }
  func.func @transform_7(%arg0: i32) -> (i32, i32) {
    %c0_i32 = arith.constant 0 : i32
    %c0_i32_0 = arith.constant 0 : i32
    return %c0_i32, %arg0 : i32, i32
  }
}

</mosaic_0001>

<llo_original>
// kernel: tpu_custom_call.1
$region0: #{tpu_custom_call.1}
  #allocation0 [shape = 'u32[]', space=smem, size = 0x4, offset = 0x4, fixed_abs, tag = 'smem constant byte address 0x4 - core index']
  #allocation1 [shape = 'u32[144,128]{1,0:T(1,128)}', space=vmem, size = 0x12000, scoped, tag = 'internal scratch']
  #allocation2 [shape = 'f32[1]{0:T(128)S(6)}', space=smem, size = 0x200, scoped, tag = 'scoped memory for tpu_custom_call.1']
  %s0 = inlined_call_operand.vmem [shape: f32[8,8], index: 0, kind: input, shape index: {}]
  %s1 = inlined_call_operand.vmem [shape: f32[256,8], index: 1, kind: input, shape index: {}]
  %s2 = inlined_call_operand.vmem [shape: f32[256,1], index: 2, kind: input, shape index: {}]
  %s3 = inlined_call_operand.vmem [shape: f32[256,256], index: 3, kind: input, shape index: {}]
  %s4 = inlined_call_operand.vmem [shape: f32[256,1], index: 4, kind: input, shape index: {}]
  %s5 = inlined_call_operand.vmem [shape: f32[1,256], index: 5, kind: input, shape index: {}]
  %s6 = inlined_call_operand.<no memory space> [shape: f32[1], index: 6, kind: input, shape index: {}]
  %s7 = inlined_call_operand.hbm [shape: f32[1,8], index: 7, kind: output, shape index: {}]
  %s8 = sld [smem:[#allocation0]]
  $region38: #{tpu_custom_call.1} parent=0
    _
  %s10 = ssub.s32 1, %s8
  %s11 = scalar_select 0, %s10, %s8
  %12 = sst [smem:[#allocation2]] %s6
  $region1: #{tpu_custom_call.1} parent=0
    #allocation3 [shape = 'u8[512]{0}', space=vmem, size = 0x400, scoped, tag = 'output window, operand 0, single buffered']
    #allocation4 [shape = 's32[1]{0}', space=sflag, size = 0x4, scoped, tag = 'scoped memory for tpu_custom_call.1']
    %13 = vsyncpa [#allocation4], 0
    // Predicated region
    $region2: #{tpu_custom_call.1} parent=1 // pred_check
      _
    $region3: #{tpu_custom_call.1} parent=1 // pred_check_branch
      %15 = sbr.rel (0) target = $region5
    $region4: #{tpu_custom_call.1} parent=1 // pred_region
      _
    $region5: #{tpu_custom_call.1} parent=1 // pred_fallthru
      _
    // Predicated region
    $region6: #{tpu_custom_call.1} parent=1 // pred_check
      _
    $region7: #{tpu_custom_call.1} parent=1 // pred_check_branch
      %17 = sbr.rel (0) target = $region9
    $region8: #{tpu_custom_call.1} parent=1 // pred_region
      _
    $region9: #{tpu_custom_call.1} parent=1 // pred_fallthru
      _
    // Predicated region
    $region10: #{tpu_custom_call.1} parent=1 // pred_check
      _
    $region11: #{tpu_custom_call.1} parent=1 // pred_check_branch
      %19 = sbr.rel (0) target = $region13
    $region12: #{tpu_custom_call.1} parent=1 // pred_region
      _
    $region13: #{tpu_custom_call.1} parent=1 // pred_fallthru
      _
    // Predicated region
    $region14: #{tpu_custom_call.1} parent=1 // pred_check
      _
    $region15: #{tpu_custom_call.1} parent=1 // pred_check_branch
      %21 = sbr.rel (0) target = $region17
    $region16: #{tpu_custom_call.1} parent=1 // pred_region
      _
    $region17: #{tpu_custom_call.1} parent=1 // pred_fallthru
      _
    // Predicated region
    $region18: #{tpu_custom_call.1} parent=1 // pred_check
      _
    $region19: #{tpu_custom_call.1} parent=1 // pred_check_branch
      %23 = sbr.rel (0) target = $region21
    $region20: #{tpu_custom_call.1} parent=1 // pred_region
      _
    $region21: #{tpu_custom_call.1} parent=1 // pred_fallthru
      _
    // Predicated region
    $region22: #{tpu_custom_call.1} parent=1 // pred_check
      _
    $region23: #{tpu_custom_call.1} parent=1 // pred_check_branch
      %25 = sbr.rel (0) target = $region25
    $region24: #{tpu_custom_call.1} parent=1 // pred_region
      _
    $region25: #{tpu_custom_call.1} parent=1 // pred_fallthru
      _
    // Predicated region
    $region26: #{tpu_custom_call.1} parent=1 // pred_check
      _
    $region27: #{tpu_custom_call.1} parent=1 // pred_check_branch
      %27 = sbr.rel (0) target = $region29
    $region28: #{tpu_custom_call.1} parent=1 // pred_region
      _
    $region29: #{tpu_custom_call.1} parent=1 // pred_fallthru
      _
    %v28 = vld [vmem:[%s1] sm:$0xff]
    %v29 = vld [vmem:[%s1 + $0x8] sm:$0xff]
    %v30 = vld [vmem:[%s1 + $0x10] sm:$0xff]
    %v31 = vld [vmem:[%s1 + $0x18] sm:$0xff]
    %v32 = vld [vmem:[%s1 + $0x20] sm:$0xff]
    %v33 = vld [vmem:[%s1 + $0x28] sm:$0xff]
    %v34 = vld [vmem:[%s1 + $0x30] sm:$0xff]
    %v35 = vld [vmem:[%s1 + $0x38] sm:$0xff]
    %v36 = vld [vmem:[%s1 + $0x40] sm:$0xff]
    %v37 = vld [vmem:[%s1 + $0x48] sm:$0xff]
    %v38 = vld [vmem:[%s1 + $0x50] sm:$0xff]
    %v39 = vld [vmem:[%s1 + $0x58] sm:$0xff]
    %v40 = vld [vmem:[%s1 + $0x60] sm:$0xff]
    %v41 = vld [vmem:[%s1 + $0x68] sm:$0xff]
    %v42 = vld [vmem:[%s1 + $0x70] sm:$0xff]
    %v43 = vld [vmem:[%s1 + $0x78] sm:$0xff]
    %v44 = vld [vmem:[%s1 + $0x80] sm:$0xff]
    %v45 = vld [vmem:[%s1 + $0x88] sm:$0xff]
    %v46 = vld [vmem:[%s1 + $0x90] sm:$0xff]
    %v47 = vld [vmem:[%s1 + $0x98] sm:$0xff]
    %v48 = vld [vmem:[%s1 + $0xa0] sm:$0xff]
    %v49 = vld [vmem:[%s1 + $0xa8] sm:$0xff]
    %v50 = vld [vmem:[%s1 + $0xb0] sm:$0xff]
    %v51 = vld [vmem:[%s1 + $0xb8] sm:$0xff]
    %v52 = vld [vmem:[%s1 + $0xc0] sm:$0xff]
    %v53 = vld [vmem:[%s1 + $0xc8] sm:$0xff]
    %v54 = vld [vmem:[%s1 + $0xd0] sm:$0xff]
    %v55 = vld [vmem:[%s1 + $0xd8] sm:$0xff]
    %v56 = vld [vmem:[%s1 + $0xe0] sm:$0xff]
    %v57 = vld [vmem:[%s1 + $0xe8] sm:$0xff]
    %v58 = vld [vmem:[%s1 + $0xf0] sm:$0xff]
    %v59 = vld [vmem:[%s1 + $0xf8] sm:$0xff]
    %v60 = vld [vmem:[%s0] sm:$0xff]
    %v61 = vld [vmem:[%s2] sm:$0xff]
    %v62 = vld [vmem:[%s2 + $0x8] sm:$0xff]
    %v63 = vld [vmem:[%s2 + $0x10] sm:$0xff]
    %v64 = vld [vmem:[%s2 + $0x18] sm:$0xff]
    %v65 = vld [vmem:[%s2 + $0x20] sm:$0xff]
    %v66 = vld [vmem:[%s2 + $0x28] sm:$0xff]
    %v67 = vld [vmem:[%s2 + $0x30] sm:$0xff]
    %v68 = vld [vmem:[%s2 + $0x38] sm:$0xff]
    %v69 = vld [vmem:[%s2 + $0x40] sm:$0xff]
    %v70 = vld [vmem:[%s2 + $0x48] sm:$0xff]
    %v71 = vld [vmem:[%s2 + $0x50] sm:$0xff]
    %v72 = vld [vmem:[%s2 + $0x58] sm:$0xff]
    %v73 = vld [vmem:[%s2 + $0x60] sm:$0xff]
    %v74 = vld [vmem:[%s2 + $0x68] sm:$0xff]
    %v75 = vld [vmem:[%s2 + $0x70] sm:$0xff]
    %v76 = vld [vmem:[%s2 + $0x78] sm:$0xff]
    %v77 = vld [vmem:[%s2 + $0x80] sm:$0xff]
    %v78 = vld [vmem:[%s2 + $0x88] sm:$0xff]
    %v79 = vld [vmem:[%s2 + $0x90] sm:$0xff]
    %v80 = vld [vmem:[%s2 + $0x98] sm:$0xff]
    %v81 = vld [vmem:[%s2 + $0xa0] sm:$0xff]
    %v82 = vld [vmem:[%s2 + $0xa8] sm:$0xff]
    %v83 = vld [vmem:[%s2 + $0xb0] sm:$0xff]
    %v84 = vld [vmem:[%s2 + $0xb8] sm:$0xff]
    %v85 = vld [vmem:[%s2 + $0xc0] sm:$0xff]
    %v86 = vld [vmem:[%s2 + $0xc8] sm:$0xff]
    %v87 = vld [vmem:[%s2 + $0xd0] sm:$0xff]
    %v88 = vld [vmem:[%s2 + $0xd8] sm:$0xff]
    %v89 = vld [vmem:[%s2 + $0xe0] sm:$0xff]
    %v90 = vld [vmem:[%s2 + $0xe8] sm:$0xff]
    %v91 = vld [vmem:[%s2 + $0xf0] sm:$0xff]
    %v92 = vld [vmem:[%s2 + $0xf8] sm:$0xff]
    %94 = vset.pattern.permute.xlu0 0
    %95 = vperm.xlu0 %94, %v61
    %v96 = vpop.permute.xlu0 %95
    %99 = vset.pattern.permute.xlu0 0
    %100 = vperm.xlu0 %99, %v62
    %v101 = vpop.permute.xlu0 %100
    %104 = vset.pattern.permute.xlu0 0
    %105 = vperm.xlu0 %104, %v63
    %v106 = vpop.permute.xlu0 %105
    %109 = vset.pattern.permute.xlu0 0
    %110 = vperm.xlu0 %109, %v64
    %v111 = vpop.permute.xlu0 %110
    %114 = vset.pattern.permute.xlu0 0
    %115 = vperm.xlu0 %114, %v65
    %v116 = vpop.permute.xlu0 %115
    %119 = vset.pattern.permute.xlu0 0
    %120 = vperm.xlu0 %119, %v66
    %v121 = vpop.permute.xlu0 %120
    %124 = vset.pattern.permute.xlu0 0
    %125 = vperm.xlu0 %124, %v67
    %v126 = vpop.permute.xlu0 %125
    %129 = vset.pattern.permute.xlu0 0
    %130 = vperm.xlu0 %129, %v68
    %v131 = vpop.permute.xlu0 %130
    %134 = vset.pattern.permute.xlu0 0
    %135 = vperm.xlu0 %134, %v69
    %v136 = vpop.permute.xlu0 %135
    %139 = vset.pattern.permute.xlu0 0
    %140 = vperm.xlu0 %139, %v70
    %v141 = vpop.permute.xlu0 %140
    %144 = vset.pattern.permute.xlu0 0
    %145 = vperm.xlu0 %144, %v71
    %v146 = vpop.permute.xlu0 %145
    %149 = vset.pattern.permute.xlu0 0
    %150 = vperm.xlu0 %149, %v72
    %v151 = vpop.permute.xlu0 %150
    %154 = vset.pattern.permute.xlu0 0
    %155 = vperm.xlu0 %154, %v73
    %v156 = vpop.permute.xlu0 %155
    %159 = vset.pattern.permute.xlu0 0
    %160 = vperm.xlu0 %159, %v74
    %v161 = vpop.permute.xlu0 %160
    %164 = vset.pattern.permute.xlu0 0
    %165 = vperm.xlu0 %164, %v75
    %v166 = vpop.permute.xlu0 %165
    %169 = vset.pattern.permute.xlu0 0
    %170 = vperm.xlu0 %169, %v76
    %v171 = vpop.permute.xlu0 %170
    %174 = vset.pattern.permute.xlu0 0
    %175 = vperm.xlu0 %174, %v77
    %v176 = vpop.permute.xlu0 %175
    %179 = vset.pattern.permute.xlu0 0
    %180 = vperm.xlu0 %179, %v78
    %v181 = vpop.permute.xlu0 %180
    %184 = vset.pattern.permute.xlu0 0
    %185 = vperm.xlu0 %184, %v79
    %v186 = vpop.permute.xlu0 %185
    %189 = vset.pattern.permute.xlu0 0
    %190 = vperm.xlu0 %189, %v80
    %v191 = vpop.permute.xlu0 %190
    %194 = vset.pattern.permute.xlu0 0
    %195 = vperm.xlu0 %194, %v81
    %v196 = vpop.permute.xlu0 %195
    %199 = vset.pattern.permute.xlu0 0
    %200 = vperm.xlu0 %199, %v82
    %v201 = vpop.permute.xlu0 %200
    %204 = vset.pattern.permute.xlu0 0
    %205 = vperm.xlu0 %204, %v83
    %v206 = vpop.permute.xlu0 %205
    %209 = vset.pattern.permute.xlu0 0
    %210 = vperm.xlu0 %209, %v84
    %v211 = vpop.permute.xlu0 %210
    %214 = vset.pattern.permute.xlu0 0
    %215 = vperm.xlu0 %214, %v85
    %v216 = vpop.permute.xlu0 %215
    %219 = vset.pattern.permute.xlu0 0
    %220 = vperm.xlu0 %219, %v86
    %v221 = vpop.permute.xlu0 %220
    %224 = vset.pattern.permute.xlu0 0
    %225 = vperm.xlu0 %224, %v87
    %v226 = vpop.permute.xlu0 %225
    %229 = vset.pattern.permute.xlu0 0
    %230 = vperm.xlu0 %229, %v88
    %v231 = vpop.permute.xlu0 %230
    %234 = vset.pattern.permute.xlu0 0
    %235 = vperm.xlu0 %234, %v89
    %v236 = vpop.permute.xlu0 %235
    %239 = vset.pattern.permute.xlu0 0
    %240 = vperm.xlu0 %239, %v90
    %v241 = vpop.permute.xlu0 %240
    %244 = vset.pattern.permute.xlu0 0
    %245 = vperm.xlu0 %244, %v91
    %v246 = vpop.permute.xlu0 %245
    %249 = vset.pattern.permute.xlu0 0
    %250 = vperm.xlu0 %249, %v92
    %v251 = vpop.permute.xlu0 %250
    %vm253 = vcmask 64512
    %v255 = vsel %vm253, %v28, 0
    %v258 = vsel %vm253, %v29, 0
    %v261 = vsel %vm253, %v30, 0
    %v264 = vsel %vm253, %v31, 0
    %v267 = vsel %vm253, %v32, 0
    %v270 = vsel %vm253, %v33, 0
    %v273 = vsel %vm253, %v34, 0
    %v276 = vsel %vm253, %v35, 0
    %v279 = vsel %vm253, %v36, 0
    %v282 = vsel %vm253, %v37, 0
    %v285 = vsel %vm253, %v38, 0
    %v288 = vsel %vm253, %v39, 0
    %v291 = vsel %vm253, %v40, 0
    %v294 = vsel %vm253, %v41, 0
    %v297 = vsel %vm253, %v42, 0
    %v300 = vsel %vm253, %v43, 0
    %v303 = vsel %vm253, %v44, 0
    %v306 = vsel %vm253, %v45, 0
    %v309 = vsel %vm253, %v46, 0
    %v312 = vsel %vm253, %v47, 0
    %v315 = vsel %vm253, %v48, 0
    %v318 = vsel %vm253, %v49, 0
    %v321 = vsel %vm253, %v50, 0
    %v324 = vsel %vm253, %v51, 0
    %v327 = vsel %vm253, %v52, 0
    %v330 = vsel %vm253, %v53, 0
    %v333 = vsel %vm253, %v54, 0
    %v336 = vsel %vm253, %v55, 0
    %v339 = vsel %vm253, %v56, 0
    %v342 = vsel %vm253, %v57, 0
    %v345 = vsel %vm253, %v58, 0
    %v348 = vsel %vm253, %v59, 0
    %350 = vmatprep.subr.mxu0 0.0
    %351 = vmatpush1.msra.mxu0 %v60
    %352 = vmatprep.subr.mxu0 0.0
    %353 = vmatpush1.msra.mxu0 0.0
    %354 = vmatprep.subr.mxu0 0.0
    %355 = vmatpush1.msra.mxu0 0.0
    %356 = vmatprep.subr.mxu0 0.0
    %357 = vmatpush1.msra.mxu0 0.0
    %358 = vmatprep.subr.mxu0 0.0
    %359 = vmatpush1.msra.mxu0 0.0
    %360 = vmatprep.subr.mxu0 0.0
    %361 = vmatpush1.msra.mxu0 0.0
    %362 = vmatprep.subr.mxu0 0.0
    %363 = vmatpush1.msra.mxu0 0.0
    %364 = vmatprep.subr.mxu0 0.0
    %365 = vmatpush1.msra.mxu0 0.0
    %366 = vmatprep.subr.mxu0 0.0
    %367 = vmatpush1.msra.mxu0 0.0
    %368 = vmatprep.subr.mxu0 0.0
    %369 = vmatpush1.msra.mxu0 0.0
    %370 = vmatprep.subr.mxu0 0.0
    %371 = vmatpush1.msra.mxu0 0.0
    %372 = vmatprep.subr.mxu0 0.0
    %373 = vmatpush1.msra.mxu0 0.0
    %374 = vmatprep.subr.mxu0 0.0
    %375 = vmatpush1.msra.mxu0 0.0
    %376 = vmatprep.subr.mxu0 0.0
    %377 = vmatpush1.msra.mxu0 0.0
    %378 = vmatprep.subr.mxu0 0.0
    %379 = vmatpush1.msra.mxu0 0.0
    %380 = vmatprep.subr.mxu0 0.0
    %381 = vmatpush1.msra.mxu0 0.0
    %382 = vmatprep.subr.mxu0 0.0
    %383 = vmatpush1.msra.mxu0 0.0
    %384 = vmatprep.subr.mxu0 0.0
    %385 = vmatpush1.msra.mxu0 0.0
    %386 = vmatprep.subr.mxu0 0.0
    %387 = vmatpush1.msra.mxu0 0.0
    %388 = vmatprep.subr.mxu0 0.0
    %389 = vmatpush1.msra.mxu0 0.0
    %390 = vmatprep.subr.mxu0 0.0
    %391 = vmatpush1.msra.mxu0 0.0
    %392 = vmatprep.subr.mxu0 0.0
    %393 = vmatpush1.msra.mxu0 0.0
    %394 = vmatprep.subr.mxu0 0.0
    %395 = vmatpush1.msra.mxu0 0.0
    %396 = vmatprep.subr.mxu0 0.0
    %397 = vmatpush1.msra.mxu0 0.0
    %398 = vmatprep.subr.mxu0 0.0
    %399 = vmatpush1.msra.mxu0 0.0
    %400 = vmatprep.subr.mxu0 0.0
    %401 = vmatpush1.msra.mxu0 0.0
    %402 = vmatprep.subr.mxu0 0.0
    %403 = vmatpush1.msra.mxu0 0.0
    %404 = vmatprep.subr.mxu0 0.0
    %405 = vmatpush1.msra.mxu0 0.0
    %406 = vmatprep.subr.mxu0 0.0
    %407 = vmatpush1.msra.mxu0 0.0
    %408 = vmatprep.subr.mxu0 0.0
    %409 = vmatpush1.msra.mxu0 0.0
    %410 = vmatprep.subr.mxu0 0.0
    %411 = vmatpush1.msra.mxu0 0.0
    %412 = vmatprep.subr.mxu0 0.0
    %413 = vmatpush1.msra.mxu0 0.0
    %414 = vmatprep.mubr.f32.mxu0 0.0
    %415 = vmatmul.mubr.f32.gmra.mrb[0].mxu0 %v255
    %v416 = vpop.f32.mrb[0].mxu0
    %v417 = vadd.f32 %v96, %v416
    %v418 = vpop.f32.mrb[0].mxu0
    %419 = vmatprep.mubr.f32.mxu0 0.0
    %420 = vmatmul.mubr.f32.gmra.mrb[0].mxu0 %v258
    %v421 = vpop.f32.mrb[0].mxu0
    %v422 = vadd.f32 %v101, %v421
    %v423 = vpop.f32.mrb[0].mxu0
    %424 = vmatprep.mubr.f32.mxu0 0.0
    %425 = vmatmul.mubr.f32.gmra.mrb[0].mxu0 %v261
    %v426 = vpop.f32.mrb[0].mxu0
    %v427 = vadd.f32 %v106, %v426
    %v428 = vpop.f32.mrb[0].mxu0
    %429 = vmatprep.mubr.f32.mxu0 0.0
    %430 = vmatmul.mubr.f32.gmra.mrb[0].mxu0 %v264
    %v431 = vpop.f32.mrb[0].mxu0
    %v432 = vadd.f32 %v111, %v431
    %v433 = vpop.f32.mrb[0].mxu0
    %434 = vmatprep.mubr.f32.mxu0 0.0
    %435 = vmatmul.mubr.f32.gmra.mrb[0].mxu0 %v267
    %v436 = vpop.f32.mrb[0].mxu0
    %v437 = vadd.f32 %v116, %v436
    %v438 = vpop.f32.mrb[0].mxu0
    %439 = vmatprep.mubr.f32.mxu0 0.0
    %440 = vmatmul.mubr.f32.gmra.mrb[0].mxu0 %v270
    %v441 = vpop.f32.mrb[0].mxu0
    %v442 = vadd.f32 %v121, %v441
    %v443 = vpop.f32.mrb[0].mxu0
    %444 = vmatprep.mubr.f32.mxu0 0.0
    %445 = vmatmul.mubr.f32.gmra.mrb[0].mxu0 %v273
    %v446 = vpop.f32.mrb[0].mxu0
    %v447 = vadd.f32 %v126, %v446
    %v448 = vpop.f32.mrb[0].mxu0
    %449 = vmatprep.mubr.f32.mxu0 0.0
    %450 = vmatmul.mubr.f32.gmra.mrb[0].mxu0 %v276
    %v451 = vpop.f32.mrb[0].mxu0
    %v452 = vadd.f32 %v131, %v451
    %v453 = vpop.f32.mrb[0].mxu0
    %454 = vmatprep.mubr.f32.mxu0 0.0
    %455 = vmatmul.mubr.f32.gmra.mrb[0].mxu0 %v279
    %v456 = vpop.f32.mrb[0].mxu0
    %v457 = vadd.f32 %v136, %v456
    %v458 = vpop.f32.mrb[0].mxu0
    %459 = vmatprep.mubr.f32.mxu0 0.0
    %460 = vmatmul.mubr.f32.gmra.mrb[0].mxu0 %v282
    %v461 = vpop.f32.mrb[0].mxu0
    %v462 = vadd.f32 %v141, %v461
    %v463 = vpop.f32.mrb[0].mxu0
    %464 = vmatprep.mubr.f32.mxu0 0.0
    %465 = vmatmul.mubr.f32.gmra.mrb[0].mxu0 %v285
    %v466 = vpop.f32.mrb[0].mxu0
    %v467 = vadd.f32 %v146, %v466
    %v468 = vpop.f32.mrb[0].mxu0
    %469 = vmatprep.mubr.f32.mxu0 0.0
    %470 = vmatmul.mubr.f32.gmra.mrb[0].mxu0 %v288
    %v471 = vpop.f32.mrb[0].mxu0
    %v472 = vadd.f32 %v151, %v471
    %v473 = vpop.f32.mrb[0].mxu0
    %474 = vmatprep.mubr.f32.mxu0 0.0
    %475 = vmatmul.mubr.f32.gmra.mrb[0].mxu0 %v291
    %v476 = vpop.f32.mrb[0].mxu0
    %v477 = vadd.f32 %v156, %v476
    %v478 = vpop.f32.mrb[0].mxu0
    %479 = vmatprep.mubr.f32.mxu0 0.0
    %480 = vmatmul.mubr.f32.gmra.mrb[0].mxu0 %v294
    %v481 = vpop.f32.mrb[0].mxu0
    %v482 = vadd.f32 %v161, %v481
    %v483 = vpop.f32.mrb[0].mxu0
    %484 = vmatprep.mubr.f32.mxu0 0.0
    %485 = vmatmul.mubr.f32.gmra.mrb[0].mxu0 %v297
    %v486 = vpop.f32.mrb[0].mxu0
    %v487 = vadd.f32 %v166, %v486
    %v488 = vpop.f32.mrb[0].mxu0
    %489 = vmatprep.mubr.f32.mxu0 0.0
    %490 = vmatmul.mubr.f32.gmra.mrb[0].mxu0 %v300
    %v491 = vpop.f32.mrb[0].mxu0
    %v492 = vadd.f32 %v171, %v491
    %v493 = vpop.f32.mrb[0].mxu0
    %494 = vmatprep.mubr.f32.mxu0 0.0
    %495 = vmatmul.mubr.f32.gmra.mrb[0].mxu0 %v303
    %v496 = vpop.f32.mrb[0].mxu0
    %v497 = vadd.f32 %v176, %v496
    %v498 = vpop.f32.mrb[0].mxu0
    %499 = vmatprep.mubr.f32.mxu0 0.0
    %500 = vmatmul.mubr.f32.gmra.mrb[0].mxu0 %v306
    %v501 = vpop.f32.mrb[0].mxu0
    %v502 = vadd.f32 %v181, %v501
    %v503 = vpop.f32.mrb[0].mxu0
    %504 = vmatprep.mubr.f32.mxu0 0.0
    %505 = vmatmul.mubr.f32.gmra.mrb[0].mxu0 %v309
    %v506 = vpop.f32.mrb[0].mxu0
    %v507 = vadd.f32 %v186, %v506
    %v508 = vpop.f32.mrb[0].mxu0
    %509 = vmatprep.mubr.f32.mxu0 0.0
    %510 = vmatmul.mubr.f32.gmra.mrb[0].mxu0 %v312
    %v511 = vpop.f32.mrb[0].mxu0
    %v512 = vadd.f32 %v191, %v511
    %v513 = vpop.f32.mrb[0].mxu0
    %514 = vmatprep.mubr.f32.mxu0 0.0
    %515 = vmatmul.mubr.f32.gmra.mrb[0].mxu0 %v315
    %v516 = vpop.f32.mrb[0].mxu0
    %v517 = vadd.f32 %v196, %v516
    %v518 = vpop.f32.mrb[0].mxu0
    %519 = vmatprep.mubr.f32.mxu0 0.0
    %520 = vmatmul.mubr.f32.gmra.mrb[0].mxu0 %v318
    %v521 = vpop.f32.mrb[0].mxu0
    %v522 = vadd.f32 %v201, %v521
    %v523 = vpop.f32.mrb[0].mxu0
    %524 = vmatprep.mubr.f32.mxu0 0.0
    %525 = vmatmul.mubr.f32.gmra.mrb[0].mxu0 %v321
    %v526 = vpop.f32.mrb[0].mxu0
    %v527 = vadd.f32 %v206, %v526
    %v528 = vpop.f32.mrb[0].mxu0
    %529 = vmatprep.mubr.f32.mxu0 0.0
    %530 = vmatmul.mubr.f32.gmra.mrb[0].mxu0 %v324
    %v531 = vpop.f32.mrb[0].mxu0
    %v532 = vadd.f32 %v211, %v531
    %v533 = vpop.f32.mrb[0].mxu0
    %534 = vmatprep.mubr.f32.mxu0 0.0
    %535 = vmatmul.mubr.f32.gmra.mrb[0].mxu0 %v327
    %v536 = vpop.f32.mrb[0].mxu0
    %v537 = vadd.f32 %v216, %v536
    %v538 = vpop.f32.mrb[0].mxu0
    %539 = vmatprep.mubr.f32.mxu0 0.0
    %540 = vmatmul.mubr.f32.gmra.mrb[0].mxu0 %v330
    %v541 = vpop.f32.mrb[0].mxu0
    %v542 = vadd.f32 %v221, %v541
    %v543 = vpop.f32.mrb[0].mxu0
    %544 = vmatprep.mubr.f32.mxu0 0.0
    %545 = vmatmul.mubr.f32.gmra.mrb[0].mxu0 %v333
    %v546 = vpop.f32.mrb[0].mxu0
    %v547 = vadd.f32 %v226, %v546
    %v548 = vpop.f32.mrb[0].mxu0
    %549 = vmatprep.mubr.f32.mxu0 0.0
    %550 = vmatmul.mubr.f32.gmra.mrb[0].mxu0 %v336
    %v551 = vpop.f32.mrb[0].mxu0
    %v552 = vadd.f32 %v231, %v551
    %v553 = vpop.f32.mrb[0].mxu0
    %554 = vmatprep.mubr.f32.mxu0 0.0
    %555 = vmatmul.mubr.f32.gmra.mrb[0].mxu0 %v339
    %v556 = vpop.f32.mrb[0].mxu0
    %v557 = vadd.f32 %v236, %v556
    %v558 = vpop.f32.mrb[0].mxu0
    %559 = vmatprep.mubr.f32.mxu0 0.0
    %560 = vmatmul.mubr.f32.gmra.mrb[0].mxu0 %v342
    %v561 = vpop.f32.mrb[0].mxu0
    %v562 = vadd.f32 %v241, %v561
    %v563 = vpop.f32.mrb[0].mxu0
    %564 = vmatprep.mubr.f32.mxu0 0.0
    %565 = vmatmul.mubr.f32.gmra.mrb[0].mxu0 %v345
    %v566 = vpop.f32.mrb[0].mxu0
    %v567 = vadd.f32 %v246, %v566
    %v568 = vpop.f32.mrb[0].mxu0
    %569 = vmatprep.mubr.f32.mxu0 0.0
    %570 = vmatmul.mubr.f32.gmra.mrb[0].mxu0 %v348
    %v571 = vpop.f32.mrb[0].mxu0
    %v572 = vadd.f32 %v251, %v571
    %v573 = vpop.f32.mrb[0].mxu0
    %574 = vdwg.mxu0
    %v575 = vmax.f32 %v417, 0.0
    %v576 = vmax.f32 %v422, 0.0
    %v577 = vmax.f32 %v427, 0.0
    %v578 = vmax.f32 %v432, 0.0
    %v579 = vmax.f32 %v437, 0.0
    %v580 = vmax.f32 %v442, 0.0
    %v581 = vmax.f32 %v447, 0.0
    %v582 = vmax.f32 %v452, 0.0
    %v583 = vmax.f32 %v457, 0.0
    %v584 = vmax.f32 %v462, 0.0
    %v585 = vmax.f32 %v467, 0.0
    %v586 = vmax.f32 %v472, 0.0
    %v587 = vmax.f32 %v477, 0.0
    %v588 = vmax.f32 %v482, 0.0
    %v589 = vmax.f32 %v487, 0.0
    %v590 = vmax.f32 %v492, 0.0
    %v591 = vmax.f32 %v497, 0.0
    %v592 = vmax.f32 %v502, 0.0
    %v593 = vmax.f32 %v507, 0.0
    %v594 = vmax.f32 %v512, 0.0
    %v595 = vmax.f32 %v517, 0.0
    %v596 = vmax.f32 %v522, 0.0
    %v597 = vmax.f32 %v527, 0.0
    %v598 = vmax.f32 %v532, 0.0
    %v599 = vmax.f32 %v537, 0.0
    %v600 = vmax.f32 %v542, 0.0
    %v601 = vmax.f32 %v547, 0.0
    %v602 = vmax.f32 %v552, 0.0
    %v603 = vmax.f32 %v557, 0.0
    %v604 = vmax.f32 %v562, 0.0
    %v605 = vmax.f32 %v567, 0.0
    %v606 = vmax.f32 %v572, 0.0
    %v607 = vld [vmem:[%s3] sm:$0xff]
    %v608 = vld [vmem:[%s3 + $0x8] sm:$0xff]
    %v609 = vld [vmem:[%s3 + $0x10] sm:$0xff]
    %v610 = vld [vmem:[%s3 + $0x18] sm:$0xff]
    %v611 = vld [vmem:[%s3 + $0x20] sm:$0xff]
    %v612 = vld [vmem:[%s3 + $0x28] sm:$0xff]
    %v613 = vld [vmem:[%s3 + $0x30] sm:$0xff]
    %v614 = vld [vmem:[%s3 + $0x38] sm:$0xff]
    %v615 = vld [vmem:[%s3 + $0x40] sm:$0xff]
    %v616 = vld [vmem:[%s3 + $0x48] sm:$0xff]
    %v617 = vld [vmem:[%s3 + $0x50] sm:$0xff]
    %v618 = vld [vmem:[%s3 + $0x58] sm:$0xff]
    %v619 = vld [vmem:[%s3 + $0x60] sm:$0xff]
    %v620 = vld [vmem:[%s3 + $0x68] sm:$0xff]
    %v621 = vld [vmem:[%s3 + $0x70] sm:$0xff]
    %v622 = vld [vmem:[%s3 + $0x78] sm:$0xff]
    %v623 = vld [vmem:[%s3 + $0x80] sm:$0xff]
    %v624 = vld [vmem:[%s3 + $0x88] sm:$0xff]
    %v625 = vld [vmem:[%s3 + $0x90] sm:$0xff]
    %v626 = vld [vmem:[%s3 + $0x98] sm:$0xff]
    %v627 = vld [vmem:[%s3 + $0xa0] sm:$0xff]
    %v628 = vld [vmem:[%s3 + $0xa8] sm:$0xff]
    %v629 = vld [vmem:[%s3 + $0xb0] sm:$0xff]
    %v630 = vld [vmem:[%s3 + $0xb8] sm:$0xff]
    %v631 = vld [vmem:[%s3 + $0xc0] sm:$0xff]
    %v632 = vld [vmem:[%s3 + $0xc8] sm:$0xff]
    %v633 = vld [vmem:[%s3 + $0xd0] sm:$0xff]
    %v634 = vld [vmem:[%s3 + $0xd8] sm:$0xff]
    %v635 = vld [vmem:[%s3 + $0xe0] sm:$0xff]
    %v636 = vld [vmem:[%s3 + $0xe8] sm:$0xff]
    %v637 = vld [vmem:[%s3 + $0xf0] sm:$0xff]
    %v638 = vld [vmem:[%s3 + $0xf8] sm:$0xff]
    %v639 = vld [vmem:[%s3 + $0x100] sm:$0xff]
    %v640 = vld [vmem:[%s3 + $0x108] sm:$0xff]
    %v641 = vld [vmem:[%s3 + $0x110] sm:$0xff]
    %v642 = vld [vmem:[%s3 + $0x118] sm:$0xff]
    %v643 = vld [vmem:[%s3 + $0x120] sm:$0xff]
    %v644 = vld [vmem:[%s3 + $0x128] sm:$0xff]
    %v645 = vld [vmem:[%s3 + $0x130] sm:$0xff]
    %v646 = vld [vmem:[%s3 + $0x138] sm:$0xff]
    %v647 = vld [vmem:[%s3 + $0x140] sm:$0xff]
    %v648 = vld [vmem:[%s3 + $0x148] sm:$0xff]
    %v649 = vld [vmem:[%s3 + $0x150] sm:$0xff]
    %v650 = vld [vmem:[%s3 + $0x158] sm:$0xff]
    %v651 = vld [vmem:[%s3 + $0x160] sm:$0xff]
    %v652 = vld [vmem:[%s3 + $0x168] sm:$0xff]
    %v653 = vld [vmem:[%s3 + $0x170] sm:$0xff]
    %v654 = vld [vmem:[%s3 + $0x178] sm:$0xff]
    %v655 = vld [vmem:[%s3 + $0x180] sm:$0xff]
    %v656 = vld [vmem:[%s3 + $0x188] sm:$0xff]
    %v657 = vld [vmem:[%s3 + $0x190] sm:$0xff]
    %v658 = vld [vmem:[%s3 + $0x198] sm:$0xff]
    %v659 = vld [vmem:[%s3 + $0x1a0] sm:$0xff]
    %v660 = vld [vmem:[%s3 + $0x1a8] sm:$0xff]
    %v661 = vld [vmem:[%s3 + $0x1b0] sm:$0xff]
    %v662 = vld [vmem:[%s3 + $0x1b8] sm:$0xff]
    %v663 = vld [vmem:[%s3 + $0x1c0] sm:$0xff]
    %v664 = vld [vmem:[%s3 + $0x1c8] sm:$0xff]
    %v665 = vld [vmem:[%s3 + $0x1d0] sm:$0xff]
    %v666 = vld [vmem:[%s3 + $0x1d8] sm:$0xff]
    %v667 = vld [vmem:[%s3 + $0x1e0] sm:$0xff]
    %v668 = vld [vmem:[%s3 + $0x1e8] sm:$0xff]
    %v669 = vld [vmem:[%s3 + $0x1f0] sm:$0xff]
    %v670 = vld [vmem:[%s3 + $0x1f8] sm:$0xff]
    %v671 = vld [vmem:[%s4] sm:$0xff]
    %v672 = vld [vmem:[%s4 + $0x8] sm:$0xff]
    %v673 = vld [vmem:[%s4 + $0x10] sm:$0xff]
    %v674 = vld [vmem:[%s4 + $0x18] sm:$0xff]
    %v675 = vld [vmem:[%s4 + $0x20] sm:$0xff]
    %v676 = vld [vmem:[%s4 + $0x28] sm:$0xff]
    %v677 = vld [vmem:[%s4 + $0x30] sm:$0xff]
    %v678 = vld [vmem:[%s4 + $0x38] sm:$0xff]
    %v679 = vld [vmem:[%s4 + $0x40] sm:$0xff]
    %v680 = vld [vmem:[%s4 + $0x48] sm:$0xff]
    %v681 = vld [vmem:[%s4 + $0x50] sm:$0xff]
    %v682 = vld [vmem:[%s4 + $0x58] sm:$0xff]
    %v683 = vld [vmem:[%s4 + $0x60] sm:$0xff]
    %v684 = vld [vmem:[%s4 + $0x68] sm:$0xff]
    %v685 = vld [vmem:[%s4 + $0x70] sm:$0xff]
    %v686 = vld [vmem:[%s4 + $0x78] sm:$0xff]
    %v687 = vld [vmem:[%s4 + $0x80] sm:$0xff]
    %v688 = vld [vmem:[%s4 + $0x88] sm:$0xff]
    %v689 = vld [vmem:[%s4 + $0x90] sm:$0xff]
    %v690 = vld [vmem:[%s4 + $0x98] sm:$0xff]
    %v691 = vld [vmem:[%s4 + $0xa0] sm:$0xff]
    %v692 = vld [vmem:[%s4 + $0xa8] sm:$0xff]
    %v693 = vld [vmem:[%s4 + $0xb0] sm:$0xff]
    %v694 = vld [vmem:[%s4 + $0xb8] sm:$0xff]
    %v695 = vld [vmem:[%s4 + $0xc0] sm:$0xff]
    %v696 = vld [vmem:[%s4 + $0xc8] sm:$0xff]
    %v697 = vld [vmem:[%s4 + $0xd0] sm:$0xff]
    %v698 = vld [vmem:[%s4 + $0xd8] sm:$0xff]
    %v699 = vld [vmem:[%s4 + $0xe0] sm:$0xff]
    %v700 = vld [vmem:[%s4 + $0xe8] sm:$0xff]
    %v701 = vld [vmem:[%s4 + $0xf0] sm:$0xff]
    %v702 = vld [vmem:[%s4 + $0xf8] sm:$0xff]
    %704 = vset.pattern.permute.xlu0 0
    %705 = vperm.xlu0 %704, %v671
    %v706 = vpop.permute.xlu0 %705
    %709 = vset.pattern.permute.xlu0 0
    %710 = vperm.xlu0 %709, %v672
    %v711 = vpop.permute.xlu0 %710
    %714 = vset.pattern.permute.xlu0 0
    %715 = vperm.xlu0 %714, %v673
    %v716 = vpop.permute.xlu0 %715
    %719 = vset.pattern.permute.xlu0 0
    %720 = vperm.xlu0 %719, %v674
    %v721 = vpop.permute.xlu0 %720
    %724 = vset.pattern.permute.xlu0 0
    %725 = vperm.xlu0 %724, %v675
    %v726 = vpop.permute.xlu0 %725
    %729 = vset.pattern.permute.xlu0 0
    %730 = vperm.xlu0 %729, %v676
    %v731 = vpop.permute.xlu0 %730
    %734 = vset.pattern.permute.xlu0 0
    %735 = vperm.xlu0 %734, %v677
    %v736 = vpop.permute.xlu0 %735
    %739 = vset.pattern.permute.xlu0 0
    %740 = vperm.xlu0 %739, %v678
    %v741 = vpop.permute.xlu0 %740
    %744 = vset.pattern.permute.xlu0 0
    %745 = vperm.xlu0 %744, %v679
    %v746 = vpop.permute.xlu0 %745
    %749 = vset.pattern.permute.xlu0 0
    %750 = vperm.xlu0 %749, %v680
    %v751 = vpop.permute.xlu0 %750
    %754 = vset.pattern.permute.xlu0 0
    %755 = vperm.xlu0 %754, %v681
    %v756 = vpop.permute.xlu0 %755
    %759 = vset.pattern.permute.xlu0 0
    %760 = vperm.xlu0 %759, %v682
    %v761 = vpop.permute.xlu0 %760
    %764 = vset.pattern.permute.xlu0 0
    %765 = vperm.xlu0 %764, %v683
    %v766 = vpop.permute.xlu0 %765
    %769 = vset.pattern.permute.xlu0 0
    %770 = vperm.xlu0 %769, %v684
    %v771 = vpop.permute.xlu0 %770
    %774 = vset.pattern.permute.xlu0 0
    %775 = vperm.xlu0 %774, %v685
    %v776 = vpop.permute.xlu0 %775
    %779 = vset.pattern.permute.xlu0 0
    %780 = vperm.xlu0 %779, %v686
    %v781 = vpop.permute.xlu0 %780
    %784 = vset.pattern.permute.xlu0 0
    %785 = vperm.xlu0 %784, %v687
    %v786 = vpop.permute.xlu0 %785
    %789 = vset.pattern.permute.xlu0 0
    %790 = vperm.xlu0 %789, %v688
    %v791 = vpop.permute.xlu0 %790
    %794 = vset.pattern.permute.xlu0 0
    %795 = vperm.xlu0 %794, %v689
    %v796 = vpop.permute.xlu0 %795
    %799 = vset.pattern.permute.xlu0 0
    %800 = vperm.xlu0 %799, %v690
    %v801 = vpop.permute.xlu0 %800
    %804 = vset.pattern.permute.xlu0 0
    %805 = vperm.xlu0 %804, %v691
    %v806 = vpop.permute.xlu0 %805
    %809 = vset.pattern.permute.xlu0 0
    %810 = vperm.xlu0 %809, %v692
    %v811 = vpop.permute.xlu0 %810
    %814 = vset.pattern.permute.xlu0 0
    %815 = vperm.xlu0 %814, %v693
    %v816 = vpop.permute.xlu0 %815
    %819 = vset.pattern.permute.xlu0 0
    %820 = vperm.xlu0 %819, %v694
    %v821 = vpop.permute.xlu0 %820
    %824 = vset.pattern.permute.xlu0 0
    %825 = vperm.xlu0 %824, %v695
    %v826 = vpop.permute.xlu0 %825
    %829 = vset.pattern.permute.xlu0 0
    %830 = vperm.xlu0 %829, %v696
    %v831 = vpop.permute.xlu0 %830
    %834 = vset.pattern.permute.xlu0 0
    %835 = vperm.xlu0 %834, %v697
    %v836 = vpop.permute.xlu0 %835
    %839 = vset.pattern.permute.xlu0 0
    %840 = vperm.xlu0 %839, %v698
    %v841 = vpop.permute.xlu0 %840
    %844 = vset.pattern.permute.xlu0 0
    %845 = vperm.xlu0 %844, %v699
    %v846 = vpop.permute.xlu0 %845
    %849 = vset.pattern.permute.xlu0 0
    %850 = vperm.xlu0 %849, %v700
    %v851 = vpop.permute.xlu0 %850
    %854 = vset.pattern.permute.xlu0 0
    %855 = vperm.xlu0 %854, %v701
    %v856 = vpop.permute.xlu0 %855
    %859 = vset.pattern.permute.xlu0 0
    %860 = vperm.xlu0 %859, %v702
    %v861 = vpop.permute.xlu0 %860
    %863 = vmatprep.subr.mxu0 0.0
    %864 = vmatpush1.msra.mxu0 %v575
    %865 = vmatprep.subr.mxu0 0.0
    %866 = vmatpush1.msra.mxu0 %v576
    %867 = vmatprep.subr.mxu0 0.0
    %868 = vmatpush1.msra.mxu0 %v577
    %869 = vmatprep.subr.mxu0 0.0
    %870 = vmatpush1.msra.mxu0 %v578
    %871 = vmatprep.subr.mxu0 0.0
    %872 = vmatpush1.msra.mxu0 %v579
    %873 = vmatprep.subr.mxu0 0.0
    %874 = vmatpush1.msra.mxu0 %v580
    %875 = vmatprep.subr.mxu0 0.0
    %876 = vmatpush1.msra.mxu0 %v581
    %877 = vmatprep.subr.mxu0 0.0
    %878 = vmatpush1.msra.mxu0 %v582
    %879 = vmatprep.subr.mxu0 0.0
    %880 = vmatpush1.msra.mxu0 %v583
    %881 = vmatprep.subr.mxu0 0.0
    %882 = vmatpush1.msra.mxu0 %v584
    %883 = vmatprep.subr.mxu0 0.0
    %884 = vmatpush1.msra.mxu0 %v585
    %885 = vmatprep.subr.mxu0 0.0
    %886 = vmatpush1.msra.mxu0 %v586
    %887 = vmatprep.subr.mxu0 0.0
    %888 = vmatpush1.msra.mxu0 %v587
    %889 = vmatprep.subr.mxu0 0.0
    %890 = vmatpush1.msra.mxu0 %v588
    %891 = vmatprep.subr.mxu0 0.0
    %892 = vmatpush1.msra.mxu0 %v589
    %893 = vmatprep.subr.mxu0 0.0
    %894 = vmatpush1.msra.mxu0 %v590
    %895 = vmatprep.subr.mxu0 0.0
    %896 = vmatpush1.msra.mxu0 %v591
    %897 = vmatprep.subr.mxu0 0.0
    %898 = vmatpush1.msra.mxu0 %v592
    %899 = vmatprep.subr.mxu0 0.0
    %900 = vmatpush1.msra.mxu0 %v593
    %901 = vmatprep.subr.mxu0 0.0
    %902 = vmatpush1.msra.mxu0 %v594
    %903 = vmatprep.subr.mxu0 0.0
    %904 = vmatpush1.msra.mxu0 %v595
    %905 = vmatprep.subr.mxu0 0.0
    %906 = vmatpush1.msra.mxu0 %v596
    %907 = vmatprep.subr.mxu0 0.0
    %908 = vmatpush1.msra.mxu0 %v597
    %909 = vmatprep.subr.mxu0 0.0
    %910 = vmatpush1.msra.mxu0 %v598
    %911 = vmatprep.subr.mxu0 0.0
    %912 = vmatpush1.msra.mxu0 %v599
    %913 = vmatprep.subr.mxu0 0.0
    %914 = vmatpush1.msra.mxu0 %v600
    %915 = vmatprep.subr.mxu0 0.0
    %916 = vmatpush1.msra.mxu0 %v601
    %917 = vmatprep.subr.mxu0 0.0
    %918 = vmatpush1.msra.mxu0 %v602
    %919 = vmatprep.subr.mxu0 0.0
    %920 = vmatpush1.msra.mxu0 %v603
    %921 = vmatprep.subr.mxu0 0.0
    %922 = vmatpush1.msra.mxu0 %v604
    %923 = vmatprep.subr.mxu0 0.0
    %924 = vmatpush1.msra.mxu0 %v605
    %925 = vmatprep.subr.mxu0 0.0
    %926 = vmatpush1.msra.mxu0 %v606
    %927 = vmatprep.mubr.f32.mxu0 %v608
    %928 = vmatmul.mubr.f32.gmra.mrb[0].mxu0 %v607
    %v929 = vpop.f32.mrb[0].mxu0
    %v930 = vadd.f32 %v706, %v929
    %v931 = vpop.f32.mrb[0].mxu0
    %932 = vmatprep.mubr.f32.mxu0 %v610
    %933 = vmatmul.mubr.f32.gmra.mrb[0].mxu0 %v609
    %v934 = vpop.f32.mrb[0].mxu0
    %v935 = vadd.f32 %v711, %v934
    %v936 = vpop.f32.mrb[0].mxu0
    %937 = vmatprep.mubr.f32.mxu0 %v612
    %938 = vmatmul.mubr.f32.gmra.mrb[0].mxu0 %v611
    %v939 = vpop.f32.mrb[0].mxu0
    %v940 = vadd.f32 %v716, %v939
    %v941 = vpop.f32.mrb[0].mxu0
    %942 = vmatprep.mubr.f32.mxu0 %v614
    %943 = vmatmul.mubr.f32.gmra.mrb[0].mxu0 %v613
    %v944 = vpop.f32.mrb[0].mxu0
    %v945 = vadd.f32 %v721, %v944
    %v946 = vpop.f32.mrb[0].mxu0
    %947 = vmatprep.mubr.f32.mxu0 %v616
    %948 = vmatmul.mubr.f32.gmra.mrb[0].mxu0 %v615
    %v949 = vpop.f32.mrb[0].mxu0
    %v950 = vadd.f32 %v726, %v949
    %v951 = vpop.f32.mrb[0].mxu0
    %952 = vmatprep.mubr.f32.mxu0 %v618
    %953 = vmatmul.mubr.f32.gmra.mrb[0].mxu0 %v617
    %v954 = vpop.f32.mrb[0].mxu0
    %v955 = vadd.f32 %v731, %v954
    %v956 = vpop.f32.mrb[0].mxu0
    %957 = vmatprep.mubr.f32.mxu0 %v620
    %958 = vmatmul.mubr.f32.gmra.mrb[0].mxu0 %v619
    %v959 = vpop.f32.mrb[0].mxu0
    %v960 = vadd.f32 %v736, %v959
    %v961 = vpop.f32.mrb[0].mxu0
    %962 = vmatprep.mubr.f32.mxu0 %v622
    %963 = vmatmul.mubr.f32.gmra.mrb[0].mxu0 %v621
    %v964 = vpop.f32.mrb[0].mxu0
    %v965 = vadd.f32 %v741, %v964
    %v966 = vpop.f32.mrb[0].mxu0
    %967 = vmatprep.mubr.f32.mxu0 %v624
    %968 = vmatmul.mubr.f32.gmra.mrb[0].mxu0 %v623
    %v969 = vpop.f32.mrb[0].mxu0
    %v970 = vadd.f32 %v746, %v969
    %v971 = vpop.f32.mrb[0].mxu0
    %972 = vmatprep.mubr.f32.mxu0 %v626
    %973 = vmatmul.mubr.f32.gmra.mrb[0].mxu0 %v625
    %v974 = vpop.f32.mrb[0].mxu0
    %v975 = vadd.f32 %v751, %v974
    %v976 = vpop.f32.mrb[0].mxu0
    %977 = vmatprep.mubr.f32.mxu0 %v628
    %978 = vmatmul.mubr.f32.gmra.mrb[0].mxu0 %v627
    %v979 = vpop.f32.mrb[0].mxu0
    %v980 = vadd.f32 %v756, %v979
    %v981 = vpop.f32.mrb[0].mxu0
    %982 = vmatprep.mubr.f32.mxu0 %v630
    %983 = vmatmul.mubr.f32.gmra.mrb[0].mxu0 %v629
    %v984 = vpop.f32.mrb[0].mxu0
    %v985 = vadd.f32 %v761, %v984
    %v986 = vpop.f32.mrb[0].mxu0
    %987 = vmatprep.mubr.f32.mxu0 %v632
    %988 = vmatmul.mubr.f32.gmra.mrb[0].mxu0 %v631
    %v989 = vpop.f32.mrb[0].mxu0
    %v990 = vadd.f32 %v766, %v989
    %v991 = vpop.f32.mrb[0].mxu0
    %992 = vmatprep.mubr.f32.mxu0 %v634
    %993 = vmatmul.mubr.f32.gmra.mrb[0].mxu0 %v633
    %v994 = vpop.f32.mrb[0].mxu0
    %v995 = vadd.f32 %v771, %v994
    %v996 = vpop.f32.mrb[0].mxu0
    %997 = vmatprep.mubr.f32.mxu0 %v636
    %998 = vmatmul.mubr.f32.gmra.mrb[0].mxu0 %v635
    %v999 = vpop.f32.mrb[0].mxu0
    %v1000 = vadd.f32 %v776, %v999
    %v1001 = vpop.f32.mrb[0].mxu0
    %1002 = vmatprep.mubr.f32.mxu0 %v638
    %1003 = vmatmul.mubr.f32.gmra.mrb[0].mxu0 %v637
    %v1004 = vpop.f32.mrb[0].mxu0
    %v1005 = vadd.f32 %v781, %v1004
    %v1006 = vpop.f32.mrb[0].mxu0
    %1007 = vmatprep.mubr.f32.mxu0 %v640
    %1008 = vmatmul.mubr.f32.gmra.mrb[0].mxu0 %v639
    %v1009 = vpop.f32.mrb[0].mxu0
    %v1010 = vadd.f32 %v786, %v1009
    %v1011 = vpop.f32.mrb[0].mxu0
    %1012 = vmatprep.mubr.f32.mxu0 %v642
    %1013 = vmatmul.mubr.f32.gmra.mrb[0].mxu0 %v641
    %v1014 = vpop.f32.mrb[0].mxu0
    %v1015 = vadd.f32 %v791, %v1014
    %v1016 = vpop.f32.mrb[0].mxu0
    %1017 = vmatprep.mubr.f32.mxu0 %v644
    %1018 = vmatmul.mubr.f32.gmra.mrb[0].mxu0 %v643
    %v1019 = vpop.f32.mrb[0].mxu0
    %v1020 = vadd.f32 %v796, %v1019
    %v1021 = vpop.f32.mrb[0].mxu0
    %1022 = vmatprep.mubr.f32.mxu0 %v646
    %1023 = vmatmul.mubr.f32.gmra.mrb[0].mxu0 %v645
    %v1024 = vpop.f32.mrb[0].mxu0
    %v1025 = vadd.f32 %v801, %v1024
    %v1026 = vpop.f32.mrb[0].mxu0
    %1027 = vmatprep.mubr.f32.mxu0 %v648
    %1028 = vmatmul.mubr.f32.gmra.mrb[0].mxu0 %v647
    %v1029 = vpop.f32.mrb[0].mxu0
    %v1030 = vadd.f32 %v806, %v1029
    %v1031 = vpop.f32.mrb[0].mxu0
    %1032 = vmatprep.mubr.f32.mxu0 %v650
    %1033 = vmatmul.mubr.f32.gmra.mrb[0].mxu0 %v649
    %v1034 = vpop.f32.mrb[0].mxu0
    %v1035 = vadd.f32 %v811, %v1034
    %v1036 = vpop.f32.mrb[0].mxu0
    %1037 = vmatprep.mubr.f32.mxu0 %v652
    %1038 = vmatmul.mubr.f32.gmra.mrb[0].mxu0 %v651
    %v1039 = vpop.f32.mrb[0].mxu0
    %v1040 = vadd.f32 %v816, %v1039
    %v1041 = vpop.f32.mrb[0].mxu0
    %1042 = vmatprep.mubr.f32.mxu0 %v654
    %1043 = vmatmul.mubr.f32.gmra.mrb[0].mxu0 %v653
    %v1044 = vpop.f32.mrb[0].mxu0
    %v1045 = vadd.f32 %v821, %v1044
    %v1046 = vpop.f32.mrb[0].mxu0
    %1047 = vmatprep.mubr.f32.mxu0 %v656
    %1048 = vmatmul.mubr.f32.gmra.mrb[0].mxu0 %v655
    %v1049 = vpop.f32.mrb[0].mxu0
    %v1050 = vadd.f32 %v826, %v1049
    %v1051 = vpop.f32.mrb[0].mxu0
    %1052 = vmatprep.mubr.f32.mxu0 %v658
    %1053 = vmatmul.mubr.f32.gmra.mrb[0].mxu0 %v657
    %v1054 = vpop.f32.mrb[0].mxu0
    %v1055 = vadd.f32 %v831, %v1054
    %v1056 = vpop.f32.mrb[0].mxu0
    %1057 = vmatprep.mubr.f32.mxu0 %v660
    %1058 = vmatmul.mubr.f32.gmra.mrb[0].mxu0 %v659
    %v1059 = vpop.f32.mrb[0].mxu0
    %v1060 = vadd.f32 %v836, %v1059
    %v1061 = vpop.f32.mrb[0].mxu0
    %1062 = vmatprep.mubr.f32.mxu0 %v662
    %1063 = vmatmul.mubr.f32.gmra.mrb[0].mxu0 %v661
    %v1064 = vpop.f32.mrb[0].mxu0
    %v1065 = vadd.f32 %v841, %v1064
    %v1066 = vpop.f32.mrb[0].mxu0
    %1067 = vmatprep.mubr.f32.mxu0 %v664
    %1068 = vmatmul.mubr.f32.gmra.mrb[0].mxu0 %v663
    %v1069 = vpop.f32.mrb[0].mxu0
    %v1070 = vadd.f32 %v846, %v1069
    %v1071 = vpop.f32.mrb[0].mxu0
    %1072 = vmatprep.mubr.f32.mxu0 %v666
    %1073 = vmatmul.mubr.f32.gmra.mrb[0].mxu0 %v665
    %v1074 = vpop.f32.mrb[0].mxu0
    %v1075 = vadd.f32 %v851, %v1074
    %v1076 = vpop.f32.mrb[0].mxu0
    %1077 = vmatprep.mubr.f32.mxu0 %v668
    %1078 = vmatmul.mubr.f32.gmra.mrb[0].mxu0 %v667
    %v1079 = vpop.f32.mrb[0].mxu0
    %v1080 = vadd.f32 %v856, %v1079
    %v1081 = vpop.f32.mrb[0].mxu0
    %1082 = vmatprep.mubr.f32.mxu0 %v670
    %1083 = vmatmul.mubr.f32.gmra.mrb[0].mxu0 %v669
    %v1084 = vpop.f32.mrb[0].mxu0
    %v1085 = vadd.f32 %v861, %v1084
    %v1086 = vpop.f32.mrb[0].mxu0
    %1087 = vdwg.mxu0
    %v1088 = vmax.f32 %v930, 0.0
    %v1089 = vmax.f32 %v935, 0.0
    %v1090 = vmax.f32 %v940, 0.0
    %v1091 = vmax.f32 %v945, 0.0
    %v1092 = vmax.f32 %v950, 0.0
    %v1093 = vmax.f32 %v955, 0.0
    %v1094 = vmax.f32 %v960, 0.0
    %v1095 = vmax.f32 %v965, 0.0
    %v1096 = vmax.f32 %v970, 0.0
    %v1097 = vmax.f32 %v975, 0.0
    %v1098 = vmax.f32 %v980, 0.0
    %v1099 = vmax.f32 %v985, 0.0
    %v1100 = vmax.f32 %v990, 0.0
    %v1101 = vmax.f32 %v995, 0.0
    %v1102 = vmax.f32 %v1000, 0.0
    %v1103 = vmax.f32 %v1005, 0.0
    %v1104 = vmax.f32 %v1010, 0.0
    %v1105 = vmax.f32 %v1015, 0.0
    %v1106 = vmax.f32 %v1020, 0.0
    %v1107 = vmax.f32 %v1025, 0.0
    %v1108 = vmax.f32 %v1030, 0.0
    %v1109 = vmax.f32 %v1035, 0.0
    %v1110 = vmax.f32 %v1040, 0.0
    %v1111 = vmax.f32 %v1045, 0.0
    %v1112 = vmax.f32 %v1050, 0.0
    %v1113 = vmax.f32 %v1055, 0.0
    %v1114 = vmax.f32 %v1060, 0.0
    %v1115 = vmax.f32 %v1065, 0.0
    %v1116 = vmax.f32 %v1070, 0.0
    %v1117 = vmax.f32 %v1075, 0.0
    %v1118 = vmax.f32 %v1080, 0.0
    %v1119 = vmax.f32 %v1085, 0.0
    %v1120 = vld [vmem:[%s5] sm:$0x3]
    %s1121 = sld [smem:[#allocation2]]
    %v1122 = vstv %s1121
    %v1124 = vlaneseq
    %v1125 = vshrl.u32 %v1124, 7
    %v1126 = vsub.s32 0, %v1125
    %v1127 = vrot.slane %v1120, %v1126
    %v1128 = vlaneseq
    %v1129 = vshrl.u32 %v1128, 7
    %v1130 = vsub.s32 1, %v1129
    %v1131 = vrot.slane %v1120, %v1130
    %1134 = vmatprep.subr.mxu0 0.0
    %1135 = vmatpush1.msra.mxu0 %v1088
    %1136 = vmatprep.subr.mxu0 0.0
    %1137 = vmatpush1.msra.mxu0 %v1089
    %1138 = vmatprep.subr.mxu0 0.0
    %1139 = vmatpush1.msra.mxu0 %v1090
    %1140 = vmatprep.subr.mxu0 0.0
    %1141 = vmatpush1.msra.mxu0 %v1091
    %1142 = vmatprep.subr.mxu0 0.0
    %1143 = vmatpush1.msra.mxu0 %v1092
    %1144 = vmatprep.subr.mxu0 0.0
    %1145 = vmatpush1.msra.mxu0 %v1093
    %1146 = vmatprep.subr.mxu0 0.0
    %1147 = vmatpush1.msra.mxu0 %v1094
    %1148 = vmatprep.subr.mxu0 0.0
    %1149 = vmatpush1.msra.mxu0 %v1095
    %1150 = vmatprep.subr.mxu0 0.0
    %1151 = vmatpush1.msra.mxu0 %v1096
    %1152 = vmatprep.subr.mxu0 0.0
    %1153 = vmatpush1.msra.mxu0 %v1097
    %1154 = vmatprep.subr.mxu0 0.0
    %1155 = vmatpush1.msra.mxu0 %v1098
    %1156 = vmatprep.subr.mxu0 0.0
    %1157 = vmatpush1.msra.mxu0 %v1099
    %1158 = vmatprep.subr.mxu0 0.0
    %1159 = vmatpush1.msra.mxu0 %v1100
    %1160 = vmatprep.subr.mxu0 0.0
    %1161 = vmatpush1.msra.mxu0 %v1101
    %1162 = vmatprep.subr.mxu0 0.0
    %1163 = vmatpush1.msra.mxu0 %v1102
    %1164 = vmatprep.subr.mxu0 0.0
    %1165 = vmatpush1.msra.mxu0 %v1103
    %1166 = vmatprep.subr.mxu0 0.0
    %1167 = vmatpush1.msra.mxu0 %v1104
    %1168 = vmatprep.subr.mxu0 0.0
    %1169 = vmatpush1.msra.mxu0 %v1105
    %1170 = vmatprep.subr.mxu0 0.0
    %1171 = vmatpush1.msra.mxu0 %v1106
    %1172 = vmatprep.subr.mxu0 0.0
    %1173 = vmatpush1.msra.mxu0 %v1107
    %1174 = vmatprep.subr.mxu0 0.0
    %1175 = vmatpush1.msra.mxu0 %v1108
    %1176 = vmatprep.subr.mxu0 0.0
    %1177 = vmatpush1.msra.mxu0 %v1109
    %1178 = vmatprep.subr.mxu0 0.0
    %1179 = vmatpush1.msra.mxu0 %v1110
    %1180 = vmatprep.subr.mxu0 0.0
    %1181 = vmatpush1.msra.mxu0 %v1111
    %1182 = vmatprep.subr.mxu0 0.0
    %1183 = vmatpush1.msra.mxu0 %v1112
    %1184 = vmatprep.subr.mxu0 0.0
    %1185 = vmatpush1.msra.mxu0 %v1113
    %1186 = vmatprep.subr.mxu0 0.0
    %1187 = vmatpush1.msra.mxu0 %v1114
    %1188 = vmatprep.subr.mxu0 0.0
    %1189 = vmatpush1.msra.mxu0 %v1115
    %1190 = vmatprep.subr.mxu0 0.0
    %1191 = vmatpush1.msra.mxu0 %v1116
    %1192 = vmatprep.subr.mxu0 0.0
    %1193 = vmatpush1.msra.mxu0 %v1117
    %1194 = vmatprep.subr.mxu0 0.0
    %1195 = vmatpush1.msra.mxu0 %v1118
    %1196 = vmatprep.subr.mxu0 0.0
    %1197 = vmatpush1.msra.mxu0 %v1119
    %1198 = vmatprep.mubr.f32.mxu0 %v1131
    %1199 = vmatmul.mubr.f32.gmra.mrb[0].mxu0 %v1127
    %v1200 = vpop.f32.mrb[0].mxu0
    %v1201 = vadd.f32 %v1122, %v1200
    %v1202 = vpop.f32.mrb[0].mxu0
    %1203 = vdwg.mxu0
    %vm1204 = vcmask 57344
    %1205 = vst.msk [vmem:[#allocation3] sm:$0x1] %vm1204, %v1201
    // Predicated region
    $region30: #{tpu_custom_call.1} parent=1 // pred_check
      _
    $region31: #{tpu_custom_call.1} parent=1 // pred_check_branch
      %1207 = sbr.rel (0) target = $region33
    $region32: #{tpu_custom_call.1} parent=1 // pred_region
      %s1209 = ssub.s32 16, 16
      %1210 = vsyncadd [#allocation4], %s1209
      %s1212 = sshll.u32 [#allocation3], 4
      %s1213 = int_to_ptr.vmem [resolvable:$true] %s1212
      %1215 = dma.vmem_to_hbm [thread:$0]  %s1213, 16, %s7, [#allocation4]
    $region33: #{tpu_custom_call.1} parent=1 // pred_fallthru
      _
    // Predicated region
    $region34: #{tpu_custom_call.1} parent=1 // pred_check
      _
    $region35: #{tpu_custom_call.1} parent=1 // pred_check_branch
      %1217 = sbr.rel (0) target = $region37
    $region36: #{tpu_custom_call.1} parent=1 // pred_region
      %1218 = dma.done [#allocation4], 16
    $region37: #{tpu_custom_call.1} parent=1 // pred_fallthru
      _
    %1219 = vsyncpa [#allocation4], 1

</llo_original>
